<compile_context>
chip_gen: v5e
topology: v5e:2x2
jax: 0.10.0
libtpu: 0.0.40
codegen_flags: <defaults>
</compile_context>

<pallas_src>
import functools

import jax
import jax.numpy as jnp
from jax.experimental import pallas as pl
from jax.experimental.pallas import tpu as pltpu


def _round_up(n, m):
    return (n + m - 1) // m * m


def mlp_kernel(x_ref, w1_ref, b1_ref, w2_ref, b2_ref, o_ref, y1_ref):
    # Layer 1: contract x (TB, In_pad) with w1 (Out_pad, In_pad) on axis 1.
    # No transpose anywhere -- the MXU consumes either operand orientation.
    y1 = jax.lax.dot_general(
        x_ref[...], w1_ref[...],
        dimension_numbers=(((1,), (1,)), ((), ())),
        preferred_element_type=jnp.float32,
    ) + b1_ref[...]                                         # (TB, Out_pad) f32
    # Stage y1 in VMEM scratch (in the MXU compute dtype) so large batch tiles
    # don't spill vregs between the two matmuls.
    y1_ref[...] = y1.astype(y1_ref.dtype)

    # Layer 2: contract y1 (TB, Out_pad) with w2 (Out_pad, Out_pad) on axis 1.
    y = jax.lax.dot_general(
        y1_ref[...], w2_ref[...],
        dimension_numbers=(((1,), (1,)), ((), ())),
        preferred_element_type=jnp.float32,
    ) + b2_ref[...]                                         # (TB, Out_pad) f32
    o_ref[...] = y.astype(o_ref.dtype)


@functools.partial(jax.jit, static_argnames=("tb", "compute_dtype"))
def linear_regression_forward(x, w1, b1, w2, b2, *, tb=512,
                              compute_dtype=jnp.float32):
    """x: (B, In); w1: (Out, In); b1: (Out,); w2: (Out, Out); b2: (Out,)."""
    B, In = x.shape
    Out = w1.shape[0]

    # ---- lane-dense padding: last dims up to multiples of 128 -------------
    In_pad = _round_up(In, 128)
    Out_pad = _round_up(Out, 128)

    # Batch tile: multiple of 8 sublanes; modest default (512) works on
    # v5e/v6e/v7x given the explicit VMEM budget below.
    TB = min(tb, _round_up(B, 8))
    B_pad = _round_up(B, TB)

    # Zero-padding keeps the math exact: padded In columns multiply padded
    # (zero) weight columns; padded Out rows/biases are zero, so the extra
    # output columns are zero and are sliced off at the end.
    x_p = jnp.pad(x.astype(compute_dtype),
                  ((0, B_pad - B), (0, In_pad - In)))
    w1_p = jnp.pad(w1.astype(compute_dtype),
                   ((0, Out_pad - Out), (0, In_pad - In)))
    w2_p = jnp.pad(w2.astype(compute_dtype),
                   ((0, Out_pad - Out), (0, Out_pad - Out)))
    # Biases stay f32 (VPU add, negligible cost, better accuracy).
    b1_p = jnp.pad(b1.astype(jnp.float32), (0, Out_pad - Out)).reshape(1, Out_pad)
    b2_p = jnp.pad(b2.astype(jnp.float32), (0, Out_pad - Out)).reshape(1, Out_pad)

    grid = (pl.cdiv(B_pad, TB),)

    out_padded = pl.pallas_call(
        mlp_kernel,
        out_shape=jax.ShapeDtypeStruct((B_pad, Out_pad), jnp.float32),
        grid_spec=pltpu.PrefetchScalarGridSpec(
            num_scalar_prefetch=0,
            grid=grid,
            in_specs=[
                # x: tiled over batch, double-buffered HBM<->VMEM pipeline.
                pl.BlockSpec((TB, In_pad), lambda i: (i, 0)),
                # Weights / biases: constant index_map -> VMEM-resident,
                # no re-DMA per batch tile.
                pl.BlockSpec((Out_pad, In_pad), lambda i: (0, 0)),
                pl.BlockSpec((1, Out_pad), lambda i: (0, 0)),
                pl.BlockSpec((Out_pad, Out_pad), lambda i: (0, 0)),
                pl.BlockSpec((1, Out_pad), lambda i: (0, 0)),
            ],
            out_specs=pl.BlockSpec((TB, Out_pad), lambda i: (i, 0)),
            scratch_shapes=[pltpu.VMEM((TB, Out_pad), compute_dtype)],
        ),
        compiler_params=pltpu.CompilerParams(
            # Batch axis is embarrassingly parallel: v7x shards it across its
            # 2 TensorCores; harmless on single-TC v5e/v6e.
            dimension_semantics=("parallel",),
            # Explicit budget with headroom for v7x's 64 MiB VMEM.
            vmem_limit_bytes=48 * 1024 * 1024,
        ),
    )(x_p, w1_p, b1_p, w2_p, b2_p)

    return out_padded[:B, :Out]


if __name__ == "__main__":
    # Small shapes consistent with the module: x is (batch, inputSize).
    batch, input_size, output_size = 8, 32, 16

    key = jax.random.PRNGKey(0)
    kx, kw1, kb1, kw2, kb2 = jax.random.split(key, 5)

    x = jax.random.normal(kx, (batch, input_size), dtype=jnp.float32)

    # Deterministic PyTorch-style init: U(-1/sqrt(fan_in), 1/sqrt(fan_in)).
    bound1 = 1.0 / jnp.sqrt(jnp.float32(input_size))
    w1 = jax.random.uniform(kw1, (output_size, input_size),
                            minval=-bound1, maxval=bound1, dtype=jnp.float32)
    b1 = jax.random.uniform(kb1, (output_size,),
                            minval=-bound1, maxval=bound1, dtype=jnp.float32)

    bound2 = 1.0 / jnp.sqrt(jnp.float32(output_size))
    w2 = jax.random.uniform(kw2, (output_size, output_size),
                            minval=-bound2, maxval=bound2, dtype=jnp.float32)
    b2 = jax.random.uniform(kb2, (output_size,),
                            minval=-bound2, maxval=bound2, dtype=jnp.float32)

    # Pure-JAX reference (same f32 math).
    y_ref = (x @ w1.T + b1) @ w2.T + b2

    # f32 path: exact match to the reference.
    y = linear_regression_forward(x, w1, b1, w2, b2)
    y = jax.block_until_ready(y)
    assert y.shape == (batch, output_size)
    assert jnp.allclose(y, y_ref, atol=1e-5, rtol=1e-5)

    # bf16-in / f32-accumulate MXU path (looser tolerance vs f32 reference).
    y_bf16 = linear_regression_forward(x, w1, b1, w2, b2,
                                       compute_dtype=jnp.bfloat16)
    y_bf16 = jax.block_until_ready(y_bf16)
    assert y_bf16.shape == (batch, output_size)
    assert jnp.allclose(y_bf16, y_ref, atol=5e-2, rtol=5e-2)

    print("KERNEL_OK")
</pallas_src>

<mosaic_0001>
module attributes {stable_mosaic.version = 11 : i64} {
  func.func @mlp_kernel(%arg0: i32, %arg1: memref<8x128xf32, #tpu.memory_space<vmem>>, %arg2: memref<128x128xf32, #tpu.memory_space<vmem>>, %arg3: memref<1x128xf32, #tpu.memory_space<vmem>>, %arg4: memref<128x128xf32, #tpu.memory_space<vmem>>, %arg5: memref<1x128xf32, #tpu.memory_space<vmem>>, %arg6: memref<8x128xf32, #tpu.memory_space<vmem>>, %arg7: memref<8x128xf32, #tpu.memory_space<vmem>>) attributes {dimension_semantics = [#tpu.dimension_semantics<parallel>], iteration_bounds = array<i64: 1>, scalar_prefetch = 0 : i64, scratch_operands = 1 : i64, tpu.core_type = #tpu.core_type<tc>, window_params = [{transform_indices = @transform_0, window_bounds = array<i64: 8, 128>}, {pipeline_mode = #tpu.pipeline_mode<synchronous>, transform_indices = @transform_1, window_bounds = array<i64: 128, 128>}, {pipeline_mode = #tpu.pipeline_mode<synchronous>, transform_indices = @transform_2, window_bounds = array<i64: 1, 128>}, {pipeline_mode = #tpu.pipeline_mode<synchronous>, transform_indices = @transform_3, window_bounds = array<i64: 128, 128>}, {pipeline_mode = #tpu.pipeline_mode<synchronous>, transform_indices = @transform_4, window_bounds = array<i64: 1, 128>}, {transform_indices = @transform_5, window_bounds = array<i64: 8, 128>}]} {
    %c0 = arith.constant 0 : index
    %c0_0 = arith.constant 0 : index
    %0 = vector.load %arg1[%c0, %c0_0] : memref<8x128xf32, #tpu.memory_space<vmem>>, vector<8x128xf32>
    %c0_1 = arith.constant 0 : index
    %c0_2 = arith.constant 0 : index
    %1 = vector.load %arg2[%c0_1, %c0_2] : memref<128x128xf32, #tpu.memory_space<vmem>>, vector<128x128xf32>
    %cst = arith.constant dense<0.000000e+00> : vector<8x128xf32>
    %2 = tpu.matmul %0, %1, %cst {dimension_numbers = #tpu.dot_dimension_numbers<[1], [1], [0], [0], [0, 0, 1, 0], [], []>} : vector<8x128xf32>, vector<128x128xf32>, vector<8x128xf32> -> vector<8x128xf32>
    %c0_3 = arith.constant 0 : index
    %c0_4 = arith.constant 0 : index
    %3 = vector.load %arg3[%c0_3, %c0_4] : memref<1x128xf32, #tpu.memory_space<vmem>>, vector<1x128xf32>
    %4 = vector.broadcast %3 : vector<1x128xf32> to vector<8x128xf32>
    %5 = arith.addf %2, %4 : vector<8x128xf32>
    %c0_5 = arith.constant 0 : index
    %c0_6 = arith.constant 0 : index
    %6 = vector.load %arg7[%c0_5, %c0_6] : memref<8x128xf32, #tpu.memory_space<vmem>>, vector<8x128xf32>
    tpu.vector_store %arg7[%c0_5, %c0_6], %5 {strides = array<i32>} : memref<8x128xf32, #tpu.memory_space<vmem>>, vector<8x128xf32>,
    %c0_7 = arith.constant 0 : index
    %c0_8 = arith.constant 0 : index
    %7 = vector.load %arg7[%c0_7, %c0_8] : memref<8x128xf32, #tpu.memory_space<vmem>>, vector<8x128xf32>
    %c0_9 = arith.constant 0 : index
    %c0_10 = arith.constant 0 : index
    %8 = vector.load %arg4[%c0_9, %c0_10] : memref<128x128xf32, #tpu.memory_space<vmem>>, vector<128x128xf32>
    %cst_11 = arith.constant dense<0.000000e+00> : vector<8x128xf32>
    %9 = tpu.matmul %7, %8, %cst_11 {dimension_numbers = #tpu.dot_dimension_numbers<[1], [1], [0], [0], [0, 0, 1, 0], [], []>} : vector<8x128xf32>, vector<128x128xf32>, vector<8x128xf32> -> vector<8x128xf32>
    %c0_12 = arith.constant 0 : index
    %c0_13 = arith.constant 0 : index
    %10 = vector.load %arg5[%c0_12, %c0_13] : memref<1x128xf32, #tpu.memory_space<vmem>>, vector<1x128xf32>
    %11 = vector.broadcast %10 : vector<1x128xf32> to vector<8x128xf32>
    %12 = arith.addf %9, %11 : vector<8x128xf32>
    %c0_14 = arith.constant 0 : index
    %c0_15 = arith.constant 0 : index
    %13 = vector.load %arg6[%c0_14, %c0_15] : memref<8x128xf32, #tpu.memory_space<vmem>>, vector<8x128xf32>
    tpu.vector_store %arg6[%c0_14, %c0_15], %12 {strides = array<i32>} : memref<8x128xf32, #tpu.memory_space<vmem>>, vector<8x128xf32>,
    return
  }
  func.func @transform_0(%arg0: i32) -> (i32, i32) {
    %c0_i32 = arith.constant 0 : i32
    %c0_i32_0 = arith.constant 0 : i32
    return %arg0, %c0_i32 : i32, i32
  }
  func.func @transform_1(%arg0: i32) -> (i32, i32) {
    %c0_i32 = arith.constant 0 : i32
    %c0_i32_0 = arith.constant 0 : i32
    %c0_i32_1 = arith.constant 0 : i32
    return %c0_i32, %c0_i32_0 : i32, i32
  }
  func.func @transform_2(%arg0: i32) -> (i32, i32) {
    %c0_i32 = arith.constant 0 : i32
    %c0_i32_0 = arith.constant 0 : i32
    %c0_i32_1 = arith.constant 0 : i32
    return %c0_i32, %c0_i32_0 : i32, i32
  }
  func.func @transform_3(%arg0: i32) -> (i32, i32) {
    %c0_i32 = arith.constant 0 : i32
    %c0_i32_0 = arith.constant 0 : i32
    %c0_i32_1 = arith.constant 0 : i32
    return %c0_i32, %c0_i32_0 : i32, i32
  }
  func.func @transform_4(%arg0: i32) -> (i32, i32) {
    %c0_i32 = arith.constant 0 : i32
    %c0_i32_0 = arith.constant 0 : i32
    %c0_i32_1 = arith.constant 0 : i32
    return %c0_i32, %c0_i32_0 : i32, i32
  }
  func.func @transform_5(%arg0: i32) -> (i32, i32) {
    %c0_i32 = arith.constant 0 : i32
    %c0_i32_0 = arith.constant 0 : i32
    return %arg0, %c0_i32 : i32, i32
  }
}

</mosaic_0001>

<llo_original>
// kernel: linear_regression_forward.1
$region0: #{linear_regression_forward.1}
  #allocation0 [shape = 'u32[]', space=smem, size = 0x4, offset = 0x4, fixed_abs, tag = 'smem constant byte address 0x4 - core index']
  #allocation1 [shape = 'u32[72,128]{1,0:T(1,128)}', space=vmem, size = 0x9000, scoped, tag = 'internal scratch']
  #allocation2 [shape = 'f32[8,128]{1,0:T(8,128)}', space=vmem, size = 0x1000, scoped, tag = 'scratch operand']
  %s0 = inlined_call_operand.vmem [shape: f32[8,128], index: 0, kind: input, shape index: {}]
  %s1 = inlined_call_operand.vmem [shape: f32[128,128], index: 1, kind: input, shape index: {}]
  %s2 = inlined_call_operand.vmem [shape: f32[1,128], index: 2, kind: input, shape index: {}]
  %s3 = inlined_call_operand.vmem [shape: f32[128,128], index: 3, kind: input, shape index: {}]
  %s4 = inlined_call_operand.vmem [shape: f32[1,128], index: 4, kind: input, shape index: {}]
  %s5 = inlined_call_operand.hbm [shape: f32[8,128], index: 5, kind: output, shape index: {}]
  %s6 = sld [smem:[#allocation0]]
  $region30: #{linear_regression_forward.1} parent=0
    _
  %s8 = ssub.s32 1, %s6
  %s9 = scalar_select 0, %s8, %s6
  $region1: #{linear_regression_forward.1} parent=0
    #allocation3 [shape = 'u8[4096]{0}', space=vmem, size = 0x1000, scoped, tag = 'output window, operand 0, single buffered']
    #allocation4 [shape = 's32[1]{0}', space=sflag, size = 0x4, scoped, tag = 'scoped memory for linear_regression_forward.1']
    %10 = vsyncpa [#allocation4], 0
    // Predicated region
    $region2: #{linear_regression_forward.1} parent=1 // pred_check
      _
    $region3: #{linear_regression_forward.1} parent=1 // pred_check_branch
      %12 = sbr.rel (0) target = $region5
    $region4: #{linear_regression_forward.1} parent=1 // pred_region
      _
    $region5: #{linear_regression_forward.1} parent=1 // pred_fallthru
      _
    // Predicated region
    $region6: #{linear_regression_forward.1} parent=1 // pred_check
      _
    $region7: #{linear_regression_forward.1} parent=1 // pred_check_branch
      %14 = sbr.rel (0) target = $region9
    $region8: #{linear_regression_forward.1} parent=1 // pred_region
      _
    $region9: #{linear_regression_forward.1} parent=1 // pred_fallthru
      _
    // Predicated region
    $region10: #{linear_regression_forward.1} parent=1 // pred_check
      _
    $region11: #{linear_regression_forward.1} parent=1 // pred_check_branch
      %16 = sbr.rel (0) target = $region13
    $region12: #{linear_regression_forward.1} parent=1 // pred_region
      _
    $region13: #{linear_regression_forward.1} parent=1 // pred_fallthru
      _
    // Predicated region
    $region14: #{linear_regression_forward.1} parent=1 // pred_check
      _
    $region15: #{linear_regression_forward.1} parent=1 // pred_check_branch
      %18 = sbr.rel (0) target = $region17
    $region16: #{linear_regression_forward.1} parent=1 // pred_region
      _
    $region17: #{linear_regression_forward.1} parent=1 // pred_fallthru
      _
    // Predicated region
    $region18: #{linear_regression_forward.1} parent=1 // pred_check
      _
    $region19: #{linear_regression_forward.1} parent=1 // pred_check_branch
      %20 = sbr.rel (0) target = $region21
    $region20: #{linear_regression_forward.1} parent=1 // pred_region
      _
    $region21: #{linear_regression_forward.1} parent=1 // pred_fallthru
      _
    %v21 = vld [vmem:[%s0] sm:$0xff]
    %v22 = vld [vmem:[%s1] sm:$0xff]
    %v23 = vld [vmem:[%s1 + $0x8] sm:$0xff]
    %v24 = vld [vmem:[%s1 + $0x10] sm:$0xff]
    %v25 = vld [vmem:[%s1 + $0x18] sm:$0xff]
    %v26 = vld [vmem:[%s1 + $0x20] sm:$0xff]
    %v27 = vld [vmem:[%s1 + $0x28] sm:$0xff]
    %v28 = vld [vmem:[%s1 + $0x30] sm:$0xff]
    %v29 = vld [vmem:[%s1 + $0x38] sm:$0xff]
    %v30 = vld [vmem:[%s1 + $0x40] sm:$0xff]
    %v31 = vld [vmem:[%s1 + $0x48] sm:$0xff]
    %v32 = vld [vmem:[%s1 + $0x50] sm:$0xff]
    %v33 = vld [vmem:[%s1 + $0x58] sm:$0xff]
    %v34 = vld [vmem:[%s1 + $0x60] sm:$0xff]
    %v35 = vld [vmem:[%s1 + $0x68] sm:$0xff]
    %v36 = vld [vmem:[%s1 + $0x70] sm:$0xff]
    %v37 = vld [vmem:[%s1 + $0x78] sm:$0xff]
    %v38 = vld [vmem:[%s2] sm:$0x1]
    %v40 = vperm.slane %v38, 0
    %42 = vmatpush.xpose.msra.mxu0 %v37
    %43 = vmatpush.xpose.msra.mxu0 %v36
    %44 = vmatpush.xpose.msra.mxu0 %v35
    %45 = vmatpush.xpose.msra.mxu0 %v34
    %46 = vmatpush.xpose.msra.mxu0 %v33
    %47 = vmatpush.xpose.msra.mxu0 %v32
    %48 = vmatpush.xpose.msra.mxu0 %v31
    %49 = vmatpush.xpose.msra.mxu0 %v30
    %50 = vmatpush.xpose.msra.mxu0 %v29
    %51 = vmatpush.xpose.msra.mxu0 %v28
    %52 = vmatpush.xpose.msra.mxu0 %v27
    %53 = vmatpush.xpose.msra.mxu0 %v26
    %54 = vmatpush.xpose.msra.mxu0 %v25
    %55 = vmatpush.xpose.msra.mxu0 %v24
    %56 = vmatpush.xpose.msra.mxu0 %v23
    %57 = vmatpush.xpose.msra.mxu0 %v22
    %58 = vmatmul.f32.gmra.mxu0 %v21
    %v59 = vpop.f32.mrf.mxu0
    %v60 = vadd.f32 %v40, %v59
    %61 = vdwg.mxu0
    %62 = vst [vmem:[#allocation2] sm:$0xff] %v60
    %v63 = vld [vmem:[#allocation2] sm:$0xff]
    %v64 = vld [vmem:[%s3] sm:$0xff]
    %v65 = vld [vmem:[%s3 + $0x8] sm:$0xff]
    %v66 = vld [vmem:[%s3 + $0x10] sm:$0xff]
    %v67 = vld [vmem:[%s3 + $0x18] sm:$0xff]
    %v68 = vld [vmem:[%s3 + $0x20] sm:$0xff]
    %v69 = vld [vmem:[%s3 + $0x28] sm:$0xff]
    %v70 = vld [vmem:[%s3 + $0x30] sm:$0xff]
    %v71 = vld [vmem:[%s3 + $0x38] sm:$0xff]
    %v72 = vld [vmem:[%s3 + $0x40] sm:$0xff]
    %v73 = vld [vmem:[%s3 + $0x48] sm:$0xff]
    %v74 = vld [vmem:[%s3 + $0x50] sm:$0xff]
    %v75 = vld [vmem:[%s3 + $0x58] sm:$0xff]
    %v76 = vld [vmem:[%s3 + $0x60] sm:$0xff]
    %v77 = vld [vmem:[%s3 + $0x68] sm:$0xff]
    %v78 = vld [vmem:[%s3 + $0x70] sm:$0xff]
    %v79 = vld [vmem:[%s3 + $0x78] sm:$0xff]
    %v80 = vld [vmem:[%s4] sm:$0x1]
    %v82 = vperm.slane %v80, 0
    %84 = vmatpush.xpose.msra.mxu0 %v79
    %85 = vmatpush.xpose.msra.mxu0 %v78
    %86 = vmatpush.xpose.msra.mxu0 %v77
    %87 = vmatpush.xpose.msra.mxu0 %v76
    %88 = vmatpush.xpose.msra.mxu0 %v75
    %89 = vmatpush.xpose.msra.mxu0 %v74
    %90 = vmatpush.xpose.msra.mxu0 %v73
    %91 = vmatpush.xpose.msra.mxu0 %v72
    %92 = vmatpush.xpose.msra.mxu0 %v71
    %93 = vmatpush.xpose.msra.mxu0 %v70
    %94 = vmatpush.xpose.msra.mxu0 %v69
    %95 = vmatpush.xpose.msra.mxu0 %v68
    %96 = vmatpush.xpose.msra.mxu0 %v67
    %97 = vmatpush.xpose.msra.mxu0 %v66
    %98 = vmatpush.xpose.msra.mxu0 %v65
    %99 = vmatpush.xpose.msra.mxu0 %v64
    %100 = vmatmul.f32.gmra.mxu0 %v63
    %v101 = vpop.f32.mrf.mxu0
    %v102 = vadd.f32 %v82, %v101
    %103 = vdwg.mxu0
    %104 = vst [vmem:[#allocation3] sm:$0xff] %v102
    // Predicated region
    $region22: #{linear_regression_forward.1} parent=1 // pred_check
      _
    $region23: #{linear_regression_forward.1} parent=1 // pred_check_branch
      %106 = sbr.rel (0) target = $region25
    $region24: #{linear_regression_forward.1} parent=1 // pred_region
      %108 = vsyncadd [#allocation4], 0
      %s110 = sshll.u32 [#allocation3], 4
      %s111 = int_to_ptr.vmem [resolvable:$true] %s110
      %s112 = sshll.u32 %s5, 4
      %s113 = int_to_ptr.hbm [resolvable:$true] %s112
      %115 = dma.vmem_to_hbm [thread:$0]  %s111, 128, %s113, [#allocation4]
    $region25: #{linear_regression_forward.1} parent=1 // pred_fallthru
      _
    // Predicated region
    $region26: #{linear_regression_forward.1} parent=1 // pred_check
      _
    $region27: #{linear_regression_forward.1} parent=1 // pred_check_branch
      %117 = sbr.rel (0) target = $region29
    $region28: #{linear_regression_forward.1} parent=1 // pred_region
      %119 = dma.done [#allocation4], 128
    $region29: #{linear_regression_forward.1} parent=1 // pred_fallthru
      _
    %120 = vsyncpa [#allocation4], 1

</llo_original>
